<compile_context>
chip_gen: v5e
topology: v5e:2x2
jax: 0.10.0
libtpu: 0.0.40
codegen_flags: <defaults>
</compile_context>

<pallas_src>
import functools

import jax
import jax.numpy as jnp
from jax.experimental import pallas as pl
from jax.experimental.pallas import tpu as pltpu

REL_TOKENS = 49  # 7x7 relevance map


def _round_up(x, m):
    return ((x + m - 1) // m) * m


# ---------------------------------------------------------------------------
# Fused kernel
# ---------------------------------------------------------------------------
def _fused_kernel(x_ref, m_ref, w_ref, t_ref, interp_ref, emb_ref, aux_ref,
                  *, B, Ck, D, t, temperature):
    """Grid: one step per K-chunk (= Ck image channels).

    emb_ref ([RB, NP] f32, RB = round_up(2B, 8)) is the resident accumulator
    for  [img ; img*mask ; 0-pad] @ [w_img | w_rel | 0-pad].
    On the last step the epilogue computes the relevance/dice stats and the
    normalised-embedding half-distances and writes them as one lane-dense,
    full-tile slab into aux_ref:
        rows [0, 2B)  : 0.5 * ||u - v||  (broadcast over lanes)
        rows [2B, 3B) : dice             (broadcast over lanes)
        rows [3B, AR) : zero padding.
    """
    k = pl.program_id(0)
    eps = 1e-12
    RB = emb_ref.shape[0]

    @pl.when(k == 0)
    def _init():
        emb_ref[...] = jnp.zeros_like(emb_ref)

    # ---- fused dual matmul: one MXU pass for [img ; img*mask] ----
    xb = x_ref[...]                                    # [B, Ck*HW] bf16
    m_bf = m_ref[...].astype(xb.dtype)                 # binary mask -> exact in bf16
    m_t = m_bf if Ck == 1 else jnp.concatenate([m_bf] * Ck, axis=-1)  # tile per channel
    lhs = jnp.concatenate([xb, xb * m_t], axis=0)      # [2B, Ck*HW]
    if RB > 2 * B:                                     # pad rows to a full (8,128) tile
        lhs = jnp.concatenate(
            [lhs, jnp.zeros((RB - 2 * B, lhs.shape[1]), lhs.dtype)], axis=0)
    emb_ref[...] += jnp.dot(lhs, w_ref[...], preferred_element_type=jnp.float32)

    @pl.when(k == pl.num_programs(0) - 1)
    def _epilogue():
        acc = emb_ref[...]                             # [RB, NP] f32
        NP = acc.shape[1]
        AR = aux_ref.shape[0]
        m = m_ref[...]                                 # [B, HW] f32

        # ---- spatial explainability (dice) ----
        # |relevance_7x7| -> bicubic upsample folded into one bf16 matmul with a
        # constant [NP, HW] matrix whose only nonzero rows are w_rel's columns
        # (so no lane slicing of acc is needed).  No overshoot clamp (reference
        # does not clamp).
        rel = jnp.dot(jnp.abs(acc[0:B, :]).astype(jnp.bfloat16), interp_ref[...],
                      preferred_element_type=jnp.float32)          # [B, HW]
        rel = rel / (jnp.sum(rel, axis=-1, keepdims=True) + eps)
        rel = rel / (jnp.max(rel, axis=-1, keepdims=True) + eps)
        binz = jax.nn.sigmoid((rel - t) * temperature)
        inter = jnp.sum(binz * m, axis=-1, keepdims=True)          # [B, 1]
        union = jnp.sum(binz * (1.0 - m), axis=-1, keepdims=True)
        dice = 2.0 * inter / (2.0 * inter + union + eps)           # [B, 1]

        # ---- spherical-distance prep (normalise embedding columns only) ----
        col = jax.lax.broadcasted_iota(jnp.int32, acc.shape, 1)
        u = jnp.where(col < D, acc, 0.0)
        u = u * jax.lax.rsqrt(jnp.sum(u * u, axis=-1, keepdims=True) + eps)
        tv = t_ref[...]                                            # [1, NP] (0-padded)
        v = tv * jax.lax.rsqrt(jnp.sum(tv * tv, axis=-1, keepdims=True) + eps)
        diff = u - v
        half = 0.5 * jnp.sqrt(jnp.sum(diff * diff, axis=-1, keepdims=True))  # [RB, 1]

        # One lane-dense, full-tile, unmasked store of the stats slab.
        parts = [jnp.broadcast_to(half[0:2 * B], (2 * B, NP)),
                 jnp.broadcast_to(dice, (B, NP))]
        if AR > 3 * B:
            parts.append(jnp.zeros((AR - 3 * B, NP), jnp.float32))
        aux_ref[...] = jnp.concatenate(parts, axis=0)


# ---------------------------------------------------------------------------
# Per-generation sizing
# ---------------------------------------------------------------------------
def _vmem_limit_bytes():
    """~3/4 of physical VMEM (v5e/v6e -> ~96 MiB, v7x -> ~48 MiB); conservative
    fallback if the trace-time hardware query is unavailable."""
    try:
        cap = int(pltpu.get_tpu_info().vmem_capacity_bytes)
    except Exception:  # best-effort query
        cap = 64 * 1024 * 1024
    return max(32 * 1024 * 1024, (cap * 3) // 4)


def _choose_channels_per_step(B, C, HW, NP, vmem_limit):
    """Largest Ck dividing C whose double-buffered x/w blocks + resident blocks
    fit in ~80% of the VMEM limit (single grid step at the shipped sizes)."""
    resident = (B * HW * 4                       # mask (f32)
                + NP * 4                         # text embedding (f32)
                + NP * HW * 2                    # interp (bf16)
                + 2 * _round_up(2 * B, 8) * NP * 4)  # emb + aux slabs (f32)
    budget = int(vmem_limit * 0.8) - resident
    best = 1
    for ck in range(1, C + 1):
        if C % ck:
            continue
        per_step = 2 * (B * ck * HW * 2 + ck * HW * NP * 2)  # double-buffered bf16
        if per_step <= budget:
            best = ck
    return best


# ---------------------------------------------------------------------------
# pallas_call wrapper
# ---------------------------------------------------------------------------
def _fused_forward_call(x2, mask2, w_cat, t_pad, interp, *, B, C, HW, D, t,
                        temperature):
    NP = w_cat.shape[-1]
    RB = _round_up(2 * B, 8)
    AR = _round_up(3 * B, 8)
    vmem_limit = _vmem_limit_bytes()
    Ck = _choose_channels_per_step(B, C, HW, NP, vmem_limit)
    n_steps = C // Ck
    KW = Ck * HW

    # Deepen weight buffering only when the reduction has enough steps for the
    # DMA to be exposed (per-step compute is tiny at M = 2B).
    w_spec_kwargs = {}
    if n_steps > 2:
        w_spec_kwargs["pipeline_mode"] = pl.Buffered(3)

    # TODO(synk): on v7x (2 TensorCores) split the K reduction over a leading
    # "parallel" grid axis plus a tiny reduce/epilogue kernel; kept single-core
    # here because the fused epilogue needs the whole accumulator resident.
    kernel = functools.partial(_fused_kernel, B=B, Ck=Ck, D=D, t=t,
                               temperature=temperature)
    emb, aux = pl.pallas_call(
        kernel,
        grid=(n_steps,),
        in_specs=[
            pl.BlockSpec((B, KW), lambda k: (0, k)),              # x  [B, C*HW] bf16
            pl.BlockSpec((B, HW), lambda k: (0, 0)),              # mask (resident)
            pl.BlockSpec((KW, NP), lambda k: (k, 0),              # packed bf16 weights
                         **w_spec_kwargs),
            pl.BlockSpec((1, NP), lambda k: (0, 0)),              # padded text embedding
            pl.BlockSpec((NP, HW), lambda k: (0, 0)),             # bf16 interp matrix
        ],
        out_specs=[
            pl.BlockSpec((RB, NP), lambda k: (0, 0)),             # embedding accumulator
            pl.BlockSpec((AR, NP), lambda k: (0, 0)),             # stats slab
        ],
        out_shape=[
            jax.ShapeDtypeStruct((RB, NP), jnp.float32),
            jax.ShapeDtypeStruct((AR, NP), jnp.float32),
        ],
        compiler_params=pltpu.CompilerParams(
            dimension_semantics=("arbitrary",),                   # K-reduction axis
            vmem_limit_bytes=vmem_limit),
    )(x2, mask2, w_cat, t_pad, interp)
    return emb, aux


# ---------------------------------------------------------------------------
# Synthetic "perceptor" parameters (deterministic) and one-time packing
# ---------------------------------------------------------------------------
def init_params(key, C, H, W, D, vocab):
    k1, k2, k3 = jax.random.split(key, 3)
    feat = C * H * W
    return dict(
        w_img=jax.random.normal(k1, (feat, D), jnp.float32) / jnp.sqrt(feat),
        w_txt=jax.random.normal(k2, (vocab, D), jnp.float32) / jnp.sqrt(vocab),
        w_rel=jax.random.normal(k3, (feat, REL_TOKENS), jnp.float32) / jnp.sqrt(feat),
    )


def pack_params(params, C, H, W):
    """One-time packing: bf16 [C*HW, NP] weights (w_img | w_rel | 0-pad), in the
    same channel-major feature order as input_img.reshape(B, C*H*W), plus a
    constant bf16 [NP, HW] bicubic-interpolation matrix in MXU form."""
    D = params["w_img"].shape[1]
    HW = H * W
    feat = C * HW
    NP = _round_up(D + REL_TOKENS, 128)
    w_cat = jnp.zeros((feat, NP), jnp.float32)
    w_cat = w_cat.at[:, :D].set(params["w_img"])
    w_cat = w_cat.at[:, D:D + REL_TOKENS].set(params["w_rel"])
    w_cat = w_cat.astype(jnp.bfloat16)
    # TODO(synk): int8 (v5e/v6e) / fp8 (v7x) weight quantisation would halve the
    # dominant HBM stream again; kept bf16 to stay close to the f32 reference.

    # Bicubic upsample (7x7 -> HxW) is a fixed linear map; fold it into a
    # constant matrix whose rows D..D+48 are resize(e_k) for each basis map.
    # TODO(synk): jax.image.resize 'cubic' differs slightly from
    # torch.nn.functional.interpolate(mode='bicubic') at image borders.
    eye = jnp.eye(REL_TOKENS, dtype=jnp.float32).reshape(REL_TOKENS, 1, 7, 7)
    basis = jax.image.resize(eye, (REL_TOKENS, 1, H, W), method="cubic")
    interp = jnp.zeros((NP, HW), jnp.float32)
    interp = interp.at[D:D + REL_TOKENS, :].set(basis.reshape(REL_TOKENS, HW))
    return dict(w_cat=w_cat, interp=interp.astype(jnp.bfloat16),
                w_txt=params["w_txt"])


# ---------------------------------------------------------------------------
# PromptLoss2 forward
# ---------------------------------------------------------------------------
def prompt_loss2_forward(input_img, mask, dynamic_lambda, tokenized_text, packed):
    weight = 1.0                  # registered buffer 'weight' = 1
    stop = float("-inf")          # registered buffer 'stop'   = -inf
    t, temperature = 0.1, 20.0

    B, C, H, W = input_img.shape
    HW = H * W
    w_cat, interp, w_txt = packed["w_cat"], packed["interp"], packed["w_txt"]
    D = w_txt.shape[1]
    NP = w_cat.shape[-1]

    # Synthetic CLIP text encoder: row gather + mean over SEQ tokens.
    # TODO(synk): the real CLIP text transformer has no Pallas equivalent here.
    text_embedding = jnp.mean(jnp.take(w_txt, tokenized_text, axis=0),
                              axis=0, keepdims=True)               # [1, D]
    t_pad = jnp.pad(text_embedding, ((0, 0), (0, NP - D)))         # [1, NP]

    # Flattened channel-major [B, C*HW] bf16 view: matches w_cat's feature
    # ordering, so no XLA transpose before the kernel and half the x bytes.
    x2 = input_img.reshape(B, C * HW).astype(jnp.bfloat16)
    mask2 = mask.reshape(B, HW).astype(jnp.float32)

    emb, aux = _fused_forward_call(
        x2, mask2, w_cat, t_pad.astype(jnp.float32), interp,
        B=B, C=C, HW=HW, D=D, t=t, temperature=temperature)

    half = aux[:2 * B, 0]          # 0.5 * ||u - v|| for [img ; img*mask] rows
    dice = aux[2 * B:3 * B, 0]     # dice per image

    # spherical distance: 2 * arcsin(||u - v|| / 2)^2
    # TODO(synk): arcsin has no Mosaic lowering; applied in glue on 2B scalars.
    dists = 2.0 * jnp.arcsin(jnp.clip(half, 0.0, 1.0)) ** 2
    dists = dists * jnp.sign(weight)

    # replace_grad(dists, maximum(dists, stop)): forward value only.
    # TODO(synk): replace_grad's custom backward is not represented.
    dists_fwd = jnp.maximum(dists, stop)
    expl_loss = (-dice) * dynamic_lambda
    loss = jnp.mean(dists_fwd) + jnp.mean(expl_loss)
    final_loss = jnp.abs(weight) * loss

    image_embedding = emb[:2 * B, :D]          # raw embeddings of [img ; img*mask]
    # im_emb_type == 'just_image' (reference module hard-codes rows 0:8)
    image_embedding = image_embedding[0:8]
    return final_loss, text_embedding, image_embedding


# ---------------------------------------------------------------------------
if __name__ == "__main__":
    B, C, H, W = 2, 4, 16, 16
    D, SEQ, VOCAB = 32, 8, 32

    key = jax.random.PRNGKey(0)
    k1, k2, k3, k4 = jax.random.split(key, 4)

    input_img = jax.random.normal(k1, (B, C, H, W), jnp.float32)
    mask = (jax.random.uniform(k2, (B, 1, H, W)) > 0.5).astype(jnp.float32)
    tokenized_text = jax.random.randint(k3, (SEQ,), 0, VOCAB)
    dynamic_lambda = jnp.float32(0.3)

    params = init_params(k4, C, H, W, D, VOCAB)
    packed = pack_params(params, C, H, W)      # one-time bf16 weight packing

    fwd = jax.jit(prompt_loss2_forward)
    final_loss, text_embedding, image_embedding = fwd(
        input_img, mask, dynamic_lambda, tokenized_text, packed)

    jax.block_until_ready((final_loss, text_embedding, image_embedding))
    assert final_loss.shape == ()
    assert text_embedding.shape == (1, D)
    assert image_embedding.shape == (2 * B, D)
    print("KERNEL_OK")
</pallas_src>

<mosaic_0001>
module attributes {stable_mosaic.version = 11 : i64} {
  func.func @_fused_kernel(%arg0: i32, %arg1: memref<2x1024xbf16, #tpu.memory_space<vmem>>, %arg2: memref<2x256xf32, #tpu.memory_space<vmem>>, %arg3: memref<1024x128xbf16, #tpu.memory_space<vmem>>, %arg4: memref<1x128xf32, #tpu.memory_space<vmem>>, %arg5: memref<128x256xbf16, #tpu.memory_space<vmem>>, %arg6: memref<8x128xf32, #tpu.memory_space<vmem>>, %arg7: memref<8x128xf32, #tpu.memory_space<vmem>>) attributes {dimension_semantics = [#tpu.dimension_semantics<arbitrary>], iteration_bounds = array<i64: 1>, scalar_prefetch = 0 : i64, scratch_operands = 0 : i64, tpu.core_type = #tpu.core_type<tc>, window_params = [{transform_indices = @transform_0, window_bounds = array<i64: 2, 1024>}, {pipeline_mode = #tpu.pipeline_mode<synchronous>, transform_indices = @transform_1, window_bounds = array<i64: 2, 256>}, {transform_indices = @transform_2, window_bounds = array<i64: 1024, 128>}, {pipeline_mode = #tpu.pipeline_mode<synchronous>, transform_indices = @transform_3, window_bounds = array<i64: 1, 128>}, {pipeline_mode = #tpu.pipeline_mode<synchronous>, transform_indices = @transform_4, window_bounds = array<i64: 128, 256>}, {pipeline_mode = #tpu.pipeline_mode<synchronous>, transform_indices = @transform_5, window_bounds = array<i64: 8, 128>}, {pipeline_mode = #tpu.pipeline_mode<synchronous>, transform_indices = @transform_6, window_bounds = array<i64: 8, 128>}]} {
    %c0_i32 = arith.constant 0 : i32
    %0 = arith.cmpi eq, %arg0, %c0_i32 : i32
    %1 = arith.extui %0 : i1 to i32
    %c0_i32_0 = arith.constant 0 : i32
    %2 = arith.cmpi ne, %1, %c0_i32_0 : i32
    scf.if %2 {
      %cst_13 = arith.constant 0.000000e+00 : f32
      %19 = vector.broadcast %cst_13 : f32 to vector<8x128xf32>
      %c0_14 = arith.constant 0 : index
      %c0_15 = arith.constant 0 : index
      %20 = vector.load %arg6[%c0_14, %c0_15] : memref<8x128xf32, #tpu.memory_space<vmem>>, vector<8x128xf32>
      tpu.vector_store %arg6[%c0_14, %c0_15], %19 {strides = array<i32>} : memref<8x128xf32, #tpu.memory_space<vmem>>, vector<8x128xf32>,
    } else {
    }
    %c0 = arith.constant 0 : index
    %c0_1 = arith.constant 0 : index
    %3 = vector.load %arg1[%c0, %c0_1] : memref<2x1024xbf16, #tpu.memory_space<vmem>>, vector<2x1024xbf16>
    %c0_2 = arith.constant 0 : index
    %c0_3 = arith.constant 0 : index
    %4 = vector.load %arg2[%c0_2, %c0_3] : memref<2x256xf32, #tpu.memory_space<vmem>>, vector<2x256xf32>
    %5 = arith.truncf %4 : vector<2x256xf32> to vector<2x256xbf16>
    %6 = tpu.concatenate %5, %5, %5, %5 in 1 : vector<2x256xbf16>, vector<2x256xbf16>, vector<2x256xbf16>, vector<2x256xbf16> -> vector<2x1024xbf16>
    %7 = arith.mulf %3, %6 : vector<2x1024xbf16>
    %8 = tpu.concatenate %3, %7 in 0 : vector<2x1024xbf16>, vector<2x1024xbf16> -> vector<4x1024xbf16>
    %cst = arith.constant 0.000000e+00 : bf16
    %9 = vector.broadcast %cst : bf16 to vector<4x1024xbf16>
    %10 = tpu.concatenate %8, %9 in 0 : vector<4x1024xbf16>, vector<4x1024xbf16> -> vector<8x1024xbf16>
    %c0_4 = arith.constant 0 : index
    %c0_5 = arith.constant 0 : index
    %11 = vector.load %arg6[%c0_4, %c0_5] : memref<8x128xf32, #tpu.memory_space<vmem>>, vector<8x128xf32>
    %c0_6 = arith.constant 0 : index
    %c0_7 = arith.constant 0 : index
    %12 = vector.load %arg3[%c0_6, %c0_7] : memref<1024x128xbf16, #tpu.memory_space<vmem>>, vector<1024x128xbf16>
    %cst_8 = arith.constant dense<0.000000e+00> : vector<8x128xf32>
    %13 = tpu.matmul %10, %12, %cst_8 {dimension_numbers = #tpu.dot_dimension_numbers<[1], [0], [0], [1], [0, 0, 1, 1], [], []>} : vector<8x1024xbf16>, vector<1024x128xbf16>, vector<8x128xf32> -> vector<8x128xf32>
    %14 = arith.addf %11, %13 : vector<8x128xf32>
    %c0_9 = arith.constant 0 : index
    %c0_10 = arith.constant 0 : index
    %15 = vector.load %arg6[%c0_9, %c0_10] : memref<8x128xf32, #tpu.memory_space<vmem>>, vector<8x128xf32>
    tpu.vector_store %arg6[%c0_9, %c0_10], %14 {strides = array<i32>} : memref<8x128xf32, #tpu.memory_space<vmem>>, vector<8x128xf32>,
    %c0_i32_11 = arith.constant 0 : i32
    %16 = arith.cmpi eq, %arg0, %c0_i32_11 : i32
    %17 = arith.extui %16 : i1 to i32
    %c0_i32_12 = arith.constant 0 : i32
    %18 = arith.cmpi ne, %17, %c0_i32_12 : i32
    scf.if %18 {
      %c0_13 = arith.constant 0 : index
      %c0_14 = arith.constant 0 : index
      %19 = vector.load %arg6[%c0_13, %c0_14] : memref<8x128xf32, #tpu.memory_space<vmem>>, vector<8x128xf32>
      %c0_15 = arith.constant 0 : index
      %c0_16 = arith.constant 0 : index
      %20 = vector.load %arg2[%c0_15, %c0_16] : memref<2x256xf32, #tpu.memory_space<vmem>>, vector<2x256xf32>
      %21 = vector.extract_strided_slice %19 {offsets = [0, 0], sizes = [2, 128], strides = [1, 1]} : vector<8x128xf32> to vector<2x128xf32>
      %22 = math.absf %21 : vector<2x128xf32>
      %23 = arith.truncf %22 : vector<2x128xf32> to vector<2x128xbf16>
      %c0_17 = arith.constant 0 : index
      %c0_18 = arith.constant 0 : index
      %24 = vector.load %arg5[%c0_17, %c0_18] : memref<128x256xbf16, #tpu.memory_space<vmem>>, vector<128x256xbf16>
      %cst_19 = arith.constant dense<0.000000e+00> : vector<2x256xf32>
      %25 = tpu.matmul %23, %24, %cst_19 {dimension_numbers = #tpu.dot_dimension_numbers<[1], [0], [0], [1], [0, 0, 1, 1], [], []>} : vector<2x128xbf16>, vector<128x256xbf16>, vector<2x256xf32> -> vector<2x256xf32>
      %cst_20 = arith.constant dense<0.000000e+00> : vector<2xf32>
      %26 = vector.multi_reduction <add>, %25, %cst_20 [1] : vector<2x256xf32> to vector<2xf32>
      %27 = vector.shape_cast %26 : vector<2xf32> to vector<2x1xf32>
      %cst_21 = arith.constant 9.99999996E-13 : f32
      %28 = vector.broadcast %cst_21 : f32 to vector<2x1xf32>
      %29 = arith.addf %27, %28 : vector<2x1xf32>
      %30 = vector.broadcast %29 : vector<2x1xf32> to vector<2x256xf32>
      %31 = arith.divf %25, %30 : vector<2x256xf32>
      %cst_22 = arith.constant dense<0xFF800000> : vector<2xf32>
      %32 = vector.multi_reduction <maximumf>, %31, %cst_22 [1] : vector<2x256xf32> to vector<2xf32>
      %33 = vector.shape_cast %32 : vector<2xf32> to vector<2x1xf32>
      %cst_23 = arith.constant 9.99999996E-13 : f32
      %34 = vector.broadcast %cst_23 : f32 to vector<2x1xf32>
      %35 = arith.addf %33, %34 : vector<2x1xf32>
      %36 = vector.broadcast %35 : vector<2x1xf32> to vector<2x256xf32>
      %37 = arith.divf %31, %36 : vector<2x256xf32>
      %cst_24 = arith.constant 1.000000e-01 : f32
      %38 = vector.broadcast %cst_24 : f32 to vector<2x256xf32>
      %39 = arith.subf %37, %38 : vector<2x256xf32>
      %cst_25 = arith.constant 2.000000e+01 : f32
      %40 = vector.broadcast %cst_25 : f32 to vector<2x256xf32>
      %41 = arith.mulf %39, %40 : vector<2x256xf32>
      %42 = arith.negf %41 : vector<2x256xf32>
      %43 = math.exp %42 : vector<2x256xf32>
      %cst_26 = arith.constant 1.000000e+00 : f32
      %44 = vector.broadcast %cst_26 : f32 to vector<2x256xf32>
      %45 = arith.addf %44, %43 : vector<2x256xf32>
      %46 = arith.divf %44, %45 : vector<2x256xf32>
      %47 = arith.mulf %46, %20 : vector<2x256xf32>
      %cst_27 = arith.constant dense<0.000000e+00> : vector<2xf32>
      %48 = vector.multi_reduction <add>, %47, %cst_27 [1] : vector<2x256xf32> to vector<2xf32>
      %49 = vector.shape_cast %48 : vector<2xf32> to vector<2x1xf32>
      %cst_28 = arith.constant 1.000000e+00 : f32
      %50 = vector.broadcast %cst_28 : f32 to vector<2x256xf32>
      %51 = arith.subf %50, %20 : vector<2x256xf32>
      %52 = arith.mulf %46, %51 : vector<2x256xf32>
      %cst_29 = arith.constant dense<0.000000e+00> : vector<2xf32>
      %53 = vector.multi_reduction <add>, %52, %cst_29 [1] : vector<2x256xf32> to vector<2xf32>
      %54 = vector.shape_cast %53 : vector<2xf32> to vector<2x1xf32>
      %cst_30 = arith.constant 2.000000e+00 : f32
      %55 = vector.broadcast %cst_30 : f32 to vector<2x1xf32>
      %56 = arith.mulf %55, %49 : vector<2x1xf32>
      %cst_31 = arith.constant 2.000000e+00 : f32
      %57 = vector.broadcast %cst_31 : f32 to vector<2x1xf32>
      %58 = arith.mulf %57, %49 : vector<2x1xf32>
      %59 = arith.addf %58, %54 : vector<2x1xf32>
      %cst_32 = arith.constant 9.99999996E-13 : f32
      %60 = vector.broadcast %cst_32 : f32 to vector<2x1xf32>
      %61 = arith.addf %59, %60 : vector<2x1xf32>
      %62 = arith.divf %56, %61 : vector<2x1xf32>
      %63 = tpu.iota {dimensions = array<i32: 1>} : vector<8x128xi32>
      %c32_i32 = arith.constant 32 : i32
      %64 = vector.broadcast %c32_i32 : i32 to vector<8x128xi32>
      %65 = arith.cmpi slt, %63, %64 : vector<8x128xi32>
      %cst_33 = arith.constant 0.000000e+00 : f32
      %66 = vector.broadcast %cst_33 : f32 to vector<8x128xf32>
      %67 = arith.select %65, %19, %66 : vector<8x128xi1>, vector<8x128xf32>
      %68 = arith.mulf %67, %67 : vector<8x128xf32>
      %cst_34 = arith.constant dense<0.000000e+00> : vector<8xf32>
      %69 = vector.multi_reduction <add>, %68, %cst_34 [1] : vector<8x128xf32> to vector<8xf32>
      %70 = vector.shape_cast %69 : vector<8xf32> to vector<8x1xf32>
      %cst_35 = arith.constant 9.99999996E-13 : f32
      %71 = vector.broadcast %cst_35 : f32 to vector<8x1xf32>
      %72 = arith.addf %70, %71 : vector<8x1xf32>
      %73 = math.rsqrt %72 : vector<8x1xf32>
      %74 = vector.broadcast %73 : vector<8x1xf32> to vector<8x128xf32>
      %75 = arith.mulf %67, %74 : vector<8x128xf32>
      %c0_36 = arith.constant 0 : index
      %c0_37 = arith.constant 0 : index
      %76 = vector.load %arg4[%c0_36, %c0_37] : memref<1x128xf32, #tpu.memory_space<vmem>>, vector<1x128xf32>
      %77 = arith.mulf %76, %76 : vector<1x128xf32>
      %cst_38 = arith.constant dense<0.000000e+00> : vector<1xf32>
      %78 = vector.multi_reduction <add>, %77, %cst_38 [1] : vector<1x128xf32> to vector<1xf32>
      %79 = vector.shape_cast %78 : vector<1xf32> to vector<1x1xf32>
      %cst_39 = arith.constant 9.99999996E-13 : f32
      %80 = vector.broadcast %cst_39 : f32 to vector<1x1xf32>
      %81 = arith.addf %79, %80 : vector<1x1xf32>
      %82 = math.rsqrt %81 : vector<1x1xf32>
      %83 = vector.broadcast %82 : vector<1x1xf32> to vector<1x128xf32>
      %84 = arith.mulf %76, %83 : vector<1x128xf32>
      %85 = vector.broadcast %84 : vector<1x128xf32> to vector<8x128xf32>
      %86 = arith.subf %75, %85 : vector<8x128xf32>
      %87 = arith.mulf %86, %86 : vector<8x128xf32>
      %cst_40 = arith.constant dense<0.000000e+00> : vector<8xf32>
      %88 = vector.multi_reduction <add>, %87, %cst_40 [1] : vector<8x128xf32> to vector<8xf32>
      %89 = vector.shape_cast %88 : vector<8xf32> to vector<8x1xf32>
      %90 = math.sqrt %89 : vector<8x1xf32>
      %cst_41 = arith.constant 5.000000e-01 : f32
      %91 = vector.broadcast %cst_41 : f32 to vector<8x1xf32>
      %92 = arith.mulf %91, %90 : vector<8x1xf32>
      %93 = vector.extract_strided_slice %92 {offsets = [0, 0], sizes = [4, 1], strides = [1, 1]} : vector<8x1xf32> to vector<4x1xf32>
      %94 = vector.shape_cast %93 : vector<4x1xf32> to vector<4x1xf32>
      %95 = vector.broadcast %94 : vector<4x1xf32> to vector<4x128xf32>
      %96 = vector.shape_cast %62 : vector<2x1xf32> to vector<2x1xf32>
      %97 = vector.broadcast %96 : vector<2x1xf32> to vector<2x128xf32>
      %cst_42 = arith.constant 0.000000e+00 : f32
      %98 = vector.broadcast %cst_42 : f32 to vector<2x128xf32>
      %99 = tpu.concatenate %95, %97, %98 in 0 : vector<4x128xf32>, vector<2x128xf32>, vector<2x128xf32> -> vector<8x128xf32>
      %c0_43 = arith.constant 0 : index
      %c0_44 = arith.constant 0 : index
      %100 = vector.load %arg7[%c0_43, %c0_44] : memref<8x128xf32, #tpu.memory_space<vmem>>, vector<8x128xf32>
      tpu.vector_store %arg7[%c0_43, %c0_44], %99 {strides = array<i32>} : memref<8x128xf32, #tpu.memory_space<vmem>>, vector<8x128xf32>,
    } else {
    }
    return
  }
  func.func @transform_0(%arg0: i32) -> (i32, i32) {
    %c0_i32 = arith.constant 0 : i32
    %c0_i32_0 = arith.constant 0 : i32
    return %c0_i32, %arg0 : i32, i32
  }
  func.func @transform_1(%arg0: i32) -> (i32, i32) {
    %c0_i32 = arith.constant 0 : i32
    %c0_i32_0 = arith.constant 0 : i32
    %c0_i32_1 = arith.constant 0 : i32
    return %c0_i32, %c0_i32_0 : i32, i32
  }
  func.func @transform_2(%arg0: i32) -> (i32, i32) {
    %c0_i32 = arith.constant 0 : i32
    %c0_i32_0 = arith.constant 0 : i32
    return %arg0, %c0_i32 : i32, i32
  }
  func.func @transform_3(%arg0: i32) -> (i32, i32) {
    %c0_i32 = arith.constant 0 : i32
    %c0_i32_0 = arith.constant 0 : i32
    %c0_i32_1 = arith.constant 0 : i32
    return %c0_i32, %c0_i32_0 : i32, i32
  }
  func.func @transform_4(%arg0: i32) -> (i32, i32) {
    %c0_i32 = arith.constant 0 : i32
    %c0_i32_0 = arith.constant 0 : i32
    %c0_i32_1 = arith.constant 0 : i32
    return %c0_i32, %c0_i32_0 : i32, i32
  }
  func.func @transform_5(%arg0: i32) -> (i32, i32) {
    %c0_i32 = arith.constant 0 : i32
    %c0_i32_0 = arith.constant 0 : i32
    %c0_i32_1 = arith.constant 0 : i32
    return %c0_i32, %c0_i32_0 : i32, i32
  }
  func.func @transform_6(%arg0: i32) -> (i32, i32) {
    %c0_i32 = arith.constant 0 : i32
    %c0_i32_0 = arith.constant 0 : i32
    %c0_i32_1 = arith.constant 0 : i32
    return %c0_i32, %c0_i32_0 : i32, i32
  }
}

</mosaic_0001>

<llo_original>
// kernel: prompt_loss2_forward.1
$region0: #{prompt_loss2_forward.1}
  #allocation0 [shape = 'u32[]', space=smem, size = 0x4, offset = 0x4, fixed_abs, tag = 'smem constant byte address 0x4 - core index']
  #allocation1 [shape = 'u32[72,128]{1,0:T(1,128)}', space=vmem, size = 0x9000, scoped, tag = 'internal scratch']
  %s0 = inlined_call_operand.vmem [shape: bf16[2,1024], index: 0, kind: input, shape index: {}]
  %s1 = inlined_call_operand.vmem [shape: f32[2,256], index: 1, kind: input, shape index: {}]
  %s2 = inlined_call_operand.hbm [shape: bf16[1024,128], index: 2, kind: input, shape index: {}]
  %s3 = inlined_call_operand.vmem [shape: f32[1,128], index: 3, kind: input, shape index: {}]
  %s4 = inlined_call_operand.vmem [shape: bf16[128,256], index: 4, kind: input, shape index: {}]
  %s5 = inlined_call_operand.vmem [shape: f32[8,128], index: 5, kind: output, shape index: {0}]
  %s6 = inlined_call_operand.vmem [shape: f32[8,128], index: 6, kind: output, shape index: {1}]
  %7 = xla_tuple %s5, %s6
  %s8 = sld [smem:[#allocation0]]
  $region50: #{prompt_loss2_forward.1} parent=0
    _
  %s10 = ssub.s32 1, %s8
  %s11 = scalar_select 0, %s10, %s8
  $region1: #{prompt_loss2_forward.1} parent=0
    #allocation2 [shape = 'u8[262144]{0}', space=vmem, size = 0x40000, scoped, tag = 'input window, operand 2, single buffered']
    #allocation3 [shape = 's32[1]{0}', space=sflag, size = 0x4, scoped, tag = 'scoped memory for prompt_loss2_forward.1']
    %12 = vsyncpa [#allocation3], 0
    // Predicated region
    $region2: #{prompt_loss2_forward.1} parent=1 // pred_check
      _
    $region3: #{prompt_loss2_forward.1} parent=1 // pred_check_branch
      %14 = sbr.rel (0) target = $region5
    $region4: #{prompt_loss2_forward.1} parent=1 // pred_region
      _
    $region5: #{prompt_loss2_forward.1} parent=1 // pred_fallthru
      _
    // Predicated region
    $region6: #{prompt_loss2_forward.1} parent=1 // pred_check
      _
    $region7: #{prompt_loss2_forward.1} parent=1 // pred_check_branch
      %16 = sbr.rel (0) target = $region9
    $region8: #{prompt_loss2_forward.1} parent=1 // pred_region
      _
    $region9: #{prompt_loss2_forward.1} parent=1 // pred_fallthru
      _
    // Predicated region
    $region10: #{prompt_loss2_forward.1} parent=1 // pred_check
      _
    $region11: #{prompt_loss2_forward.1} parent=1 // pred_check_branch
      %18 = sbr.rel (0) target = $region13
    $region12: #{prompt_loss2_forward.1} parent=1 // pred_region
      %20 = vsyncadd [#allocation3], 0
      %s21 = sshll.u32 %s2, 4
      %s22 = int_to_ptr.hbm [resolvable:$true] %s21
      %s23 = sshll.u32 [#allocation2], 4
      %s24 = int_to_ptr.vmem [resolvable:$true] %s23
      %29 = dma.hbm_to_vmem [thread:$0]  %s22, 8192, %s24, [#allocation3], 64, 64, 4
    $region13: #{prompt_loss2_forward.1} parent=1 // pred_fallthru
      _
    // Predicated region
    $region14: #{prompt_loss2_forward.1} parent=1 // pred_check
      _
    $region15: #{prompt_loss2_forward.1} parent=1 // pred_check_branch
      %31 = sbr.rel (0) target = $region17
    $region16: #{prompt_loss2_forward.1} parent=1 // pred_region
      _
    $region17: #{prompt_loss2_forward.1} parent=1 // pred_fallthru
      _
    // Predicated region
    $region18: #{prompt_loss2_forward.1} parent=1 // pred_check
      _
    $region19: #{prompt_loss2_forward.1} parent=1 // pred_check_branch
      %33 = sbr.rel (0) target = $region21
    $region20: #{prompt_loss2_forward.1} parent=1 // pred_region
      _
    $region21: #{prompt_loss2_forward.1} parent=1 // pred_fallthru
      _
    // Predicated region
    $region22: #{prompt_loss2_forward.1} parent=1 // pred_check
      _
    $region23: #{prompt_loss2_forward.1} parent=1 // pred_check_branch
      %35 = sbr.rel (0) target = $region25
    $region24: #{prompt_loss2_forward.1} parent=1 // pred_region
      %37 = dma.done [#allocation3], 8192
    $region25: #{prompt_loss2_forward.1} parent=1 // pred_fallthru
      _
    %p39 = scmp.eq.s32.totalorder 0, 0
    // Predicated region
    $region26: #{prompt_loss2_forward.1} parent=1 // pred_check
      %p40 = pneg %p39
    $region27: #{prompt_loss2_forward.1} parent=1 // pred_check_branch
      %42 = sbr.rel (%p40) target = $region29
    $region28: #{prompt_loss2_forward.1} parent=1 // pred_region
      %43 = vst [vmem:[%s5] sm:$0xff] 0.0
    $region29: #{prompt_loss2_forward.1} parent=1 // pred_fallthru
      _
    %v44 = vld [vmem:[%s0] sm:$0xff]
    %v45 = vld [vmem:[%s1] sm:$0xf]
    %47 = vst [vmem:[#allocation1] ss:$4 sm:$0xff] %v45
    %v48 = vld.sshfl [vmem:[#allocation1] sm:$0xff pattern:$0x73625140]
    %v49 = vld.sshfl [vmem:[#allocation1 + $0x8] sm:$0xff pattern:$0x73625140]
    %v52 = vpack.c.bf16 %v49, %v48
    %v54 = vunpack.c.l.b16 %v52
    %v55 = vunpack.c.h.b16 %v52
    %v56 = vpack.c.b16 %v54, %v54
    %v57 = vpack.c.b16 %v55, %v55
    %v60 = vunpack.c.l.bf16 %v44
    %v61 = vunpack.c.h.bf16 %v44
    %v62 = vunpack.c.l.bf16 %v56
    %v63 = vunpack.c.l.bf16 %v57
    %v66 = vrot.slane %v63, 6
    %v67 = vrot.slane %v62, 4
    %v68 = vrot.slane %v63, 2
    %vm69 = vcmask 1041408
    %v70 = vsel %vm69, %v62, %v66
    %vm71 = vcmask 1045508
    %v72 = vsel %vm71, %v67, %v68
    %vm73 = vcmask 1043456
    %v74 = vsel %vm73, %v70, %v72
    %v76 = vmul.f32 %v60, %v74
    %v77 = vmul.f32 %v61, %v74
    %80 = vst [vmem:[#allocation1] ss:$4 sm:$0xff] %v76
    %s81 = scalar_lea.vmem [#allocation1], 32
    %82 = vst [vmem:[%s81] ss:$4 sm:$0xff] %v77
    %v83 = vld.sshfl [vmem:[#allocation1] sm:$0xff pattern:$0x73625140]
    %v84 = vld.sshfl [vmem:[#allocation1 + $0x8] sm:$0xff pattern:$0x73625140]
    %v85 = vld.sshfl [vmem:[#allocation1 + $0x10] sm:$0xff pattern:$0x73625140]
    %v86 = vld.sshfl [vmem:[#allocation1 + $0x18] sm:$0xff pattern:$0x73625140]
    %v87 = vld.sshfl [vmem:[#allocation1 + $0x20] sm:$0xff pattern:$0x73625140]
    %v88 = vld.sshfl [vmem:[#allocation1 + $0x28] sm:$0xff pattern:$0x73625140]
    %v89 = vld.sshfl [vmem:[#allocation1 + $0x30] sm:$0xff pattern:$0x73625140]
    %v90 = vld.sshfl [vmem:[#allocation1 + $0x38] sm:$0xff pattern:$0x73625140]
    %v99 = vpack.c.bf16 %v84, %v83
    %v100 = vpack.c.bf16 %v86, %v85
    %v101 = vpack.c.bf16 %v88, %v87
    %v102 = vpack.c.bf16 %v90, %v89
    %104 = vst [vmem:[#allocation1] ss:$9 sm:$0xff] %v44
    %v105 = vld [vmem:[#allocation1] sm:$0xff]
    %v106 = vld [vmem:[#allocation1 + $0x9] sm:$0xff]
    %v107 = vld [vmem:[#allocation1 + $0x12] sm:$0xff]
    %v108 = vld [vmem:[#allocation1 + $0x1b] sm:$0xff]
    %v109 = vld [vmem:[#allocation1 + $0x24] sm:$0xff]
    %v110 = vld [vmem:[#allocation1 + $0x2d] sm:$0xff]
    %v111 = vld [vmem:[#allocation1 + $0x36] sm:$0xff]
    %v112 = vld [vmem:[#allocation1 + $0x3f] sm:$0xff]
    %v117 = vunpack.c.l.b16 %v99
    %v118 = vunpack.c.h.b16 %v99
    %v119 = vunpack.c.l.b16 %v100
    %v120 = vunpack.c.h.b16 %v100
    %v121 = vunpack.c.l.b16 %v101
    %v122 = vunpack.c.h.b16 %v101
    %v123 = vunpack.c.l.b16 %v102
    %v124 = vunpack.c.h.b16 %v102
    %v125 = vpack.c.b16 %v117, %v117
    %v126 = vpack.c.b16 %v118, %v118
    %v127 = vpack.c.b16 %v119, %v119
    %v128 = vpack.c.b16 %v120, %v120
    %v129 = vpack.c.b16 %v121, %v121
    %v130 = vpack.c.b16 %v122, %v122
    %v131 = vpack.c.b16 %v123, %v123
    %v132 = vpack.c.b16 %v124, %v124
    %v133 = vrot.slane %v125, 7
    %v134 = vrot.slane %v126, 7
    %v135 = vrot.slane %v127, 7
    %v136 = vrot.slane %v128, 7
    %v137 = vrot.slane %v129, 7
    %v138 = vrot.slane %v130, 7
    %v139 = vrot.slane %v131, 7
    %v140 = vrot.slane %v132, 7
    %vm141 = vcmask 1040384
    %v143 = vsel %vm141, %v105, %v133
    %v145 = vsel %vm141, %v106, %v134
    %v147 = vsel %vm141, %v107, %v135
    %v149 = vsel %vm141, %v108, %v136
    %v151 = vsel %vm141, %v109, %v137
    %v153 = vsel %vm141, %v110, %v138
    %v155 = vsel %vm141, %v111, %v139
    %v157 = vsel %vm141, %v112, %v140
    %v159 = vsel %vm69, %v143, 0
    %v161 = vsel %vm69, %v145, 0
    %v163 = vsel %vm69, %v147, 0
    %v165 = vsel %vm69, %v149, 0
    %v167 = vsel %vm69, %v151, 0
    %v169 = vsel %vm69, %v153, 0
    %v171 = vsel %vm69, %v155, 0
    %v173 = vsel %vm69, %v157, 0
    %v175 = vld [vmem:[%s5] sm:$0xff]
    %v176 = vld [vmem:[#allocation2] sm:$0xf]
    %v177 = vld [vmem:[#allocation2 + $0x4] sm:$0xf]
    %v178 = vld [vmem:[#allocation2 + $0x8] sm:$0xf]
    %v179 = vld [vmem:[#allocation2 + $0xc] sm:$0xf]
    %v180 = vld [vmem:[#allocation2 + $0x10] sm:$0xf]
    %v181 = vld [vmem:[#allocation2 + $0x14] sm:$0xf]
    %v182 = vld [vmem:[#allocation2 + $0x18] sm:$0xf]
    %v183 = vld [vmem:[#allocation2 + $0x1c] sm:$0xf]
    %v184 = vld [vmem:[#allocation2 + $0x20] sm:$0xf]
    %v185 = vld [vmem:[#allocation2 + $0x24] sm:$0xf]
    %v186 = vld [vmem:[#allocation2 + $0x28] sm:$0xf]
    %v187 = vld [vmem:[#allocation2 + $0x2c] sm:$0xf]
    %v188 = vld [vmem:[#allocation2 + $0x30] sm:$0xf]
    %v189 = vld [vmem:[#allocation2 + $0x34] sm:$0xf]
    %v190 = vld [vmem:[#allocation2 + $0x38] sm:$0xf]
    %v191 = vld [vmem:[#allocation2 + $0x3c] sm:$0xf]
    %v192 = vld [vmem:[#allocation2 + $0x40] sm:$0xf]
    %v193 = vld [vmem:[#allocation2 + $0x44] sm:$0xf]
    %v194 = vld [vmem:[#allocation2 + $0x48] sm:$0xf]
    %v195 = vld [vmem:[#allocation2 + $0x4c] sm:$0xf]
    %v196 = vld [vmem:[#allocation2 + $0x50] sm:$0xf]
    %v197 = vld [vmem:[#allocation2 + $0x54] sm:$0xf]
    %v198 = vld [vmem:[#allocation2 + $0x58] sm:$0xf]
    %v199 = vld [vmem:[#allocation2 + $0x5c] sm:$0xf]
    %v200 = vld [vmem:[#allocation2 + $0x60] sm:$0xf]
    %v201 = vld [vmem:[#allocation2 + $0x64] sm:$0xf]
    %v202 = vld [vmem:[#allocation2 + $0x68] sm:$0xf]
    %v203 = vld [vmem:[#allocation2 + $0x6c] sm:$0xf]
    %v204 = vld [vmem:[#allocation2 + $0x70] sm:$0xf]
    %v205 = vld [vmem:[#allocation2 + $0x74] sm:$0xf]
    %v206 = vld [vmem:[#allocation2 + $0x78] sm:$0xf]
    %v207 = vld [vmem:[#allocation2 + $0x7c] sm:$0xf]
    %v208 = vld [vmem:[#allocation2 + $0x80] sm:$0xf]
    %v209 = vld [vmem:[#allocation2 + $0x84] sm:$0xf]
    %v210 = vld [vmem:[#allocation2 + $0x88] sm:$0xf]
    %v211 = vld [vmem:[#allocation2 + $0x8c] sm:$0xf]
    %v212 = vld [vmem:[#allocation2 + $0x90] sm:$0xf]
    %v213 = vld [vmem:[#allocation2 + $0x94] sm:$0xf]
    %v214 = vld [vmem:[#allocation2 + $0x98] sm:$0xf]
    %v215 = vld [vmem:[#allocation2 + $0x9c] sm:$0xf]
    %v216 = vld [vmem:[#allocation2 + $0xa0] sm:$0xf]
    %v217 = vld [vmem:[#allocation2 + $0xa4] sm:$0xf]
    %v218 = vld [vmem:[#allocation2 + $0xa8] sm:$0xf]
    %v219 = vld [vmem:[#allocation2 + $0xac] sm:$0xf]
    %v220 = vld [vmem:[#allocation2 + $0xb0] sm:$0xf]
    %v221 = vld [vmem:[#allocation2 + $0xb4] sm:$0xf]
    %v222 = vld [vmem:[#allocation2 + $0xb8] sm:$0xf]
    %v223 = vld [vmem:[#allocation2 + $0xbc] sm:$0xf]
    %v224 = vld [vmem:[#allocation2 + $0xc0] sm:$0xf]
    %v225 = vld [vmem:[#allocation2 + $0xc4] sm:$0xf]
    %v226 = vld [vmem:[#allocation2 + $0xc8] sm:$0xf]
    %v227 = vld [vmem:[#allocation2 + $0xcc] sm:$0xf]
    %v228 = vld [vmem:[#allocation2 + $0xd0] sm:$0xf]
    %v229 = vld [vmem:[#allocation2 + $0xd4] sm:$0xf]
    %v230 = vld [vmem:[#allocation2 + $0xd8] sm:$0xf]
    %v231 = vld [vmem:[#allocation2 + $0xdc] sm:$0xf]
    %v232 = vld [vmem:[#allocation2 + $0xe0] sm:$0xf]
    %v233 = vld [vmem:[#allocation2 + $0xe4] sm:$0xf]
    %v234 = vld [vmem:[#allocation2 + $0xe8] sm:$0xf]
    %v235 = vld [vmem:[#allocation2 + $0xec] sm:$0xf]
    %v236 = vld [vmem:[#allocation2 + $0xf0] sm:$0xf]
    %v237 = vld [vmem:[#allocation2 + $0xf4] sm:$0xf]
    %v238 = vld [vmem:[#allocation2 + $0xf8] sm:$0xf]
    %v239 = vld [vmem:[#allocation2 + $0xfc] sm:$0xf]
    %v240 = vld [vmem:[#allocation2 + $0x100] sm:$0xf]
    %v241 = vld [vmem:[#allocation2 + $0x104] sm:$0xf]
    %v242 = vld [vmem:[#allocation2 + $0x108] sm:$0xf]
    %v243 = vld [vmem:[#allocation2 + $0x10c] sm:$0xf]
    %v244 = vld [vmem:[#allocation2 + $0x110] sm:$0xf]
    %v245 = vld [vmem:[#allocation2 + $0x114] sm:$0xf]
    %v246 = vld [vmem:[#allocation2 + $0x118] sm:$0xf]
    %v247 = vld [vmem:[#allocation2 + $0x11c] sm:$0xf]
    %v248 = vld [vmem:[#allocation2 + $0x120] sm:$0xf]
    %v249 = vld [vmem:[#allocation2 + $0x124] sm:$0xf]
    %v250 = vld [vmem:[#allocation2 + $0x128] sm:$0xf]
    %v251 = vld [vmem:[#allocation2 + $0x12c] sm:$0xf]
    %v252 = vld [vmem:[#allocation2 + $0x130] sm:$0xf]
    %v253 = vld [vmem:[#allocation2 + $0x134] sm:$0xf]
    %v254 = vld [vmem:[#allocation2 + $0x138] sm:$0xf]
    %v255 = vld [vmem:[#allocation2 + $0x13c] sm:$0xf]
    %v256 = vld [vmem:[#allocation2 + $0x140] sm:$0xf]
    %v257 = vld [vmem:[#allocation2 + $0x144] sm:$0xf]
    %v258 = vld [vmem:[#allocation2 + $0x148] sm:$0xf]
    %v259 = vld [vmem:[#allocation2 + $0x14c] sm:$0xf]
    %v260 = vld [vmem:[#allocation2 + $0x150] sm:$0xf]
    %v261 = vld [vmem:[#allocation2 + $0x154] sm:$0xf]
    %v262 = vld [vmem:[#allocation2 + $0x158] sm:$0xf]
    %v263 = vld [vmem:[#allocation2 + $0x15c] sm:$0xf]
    %v264 = vld [vmem:[#allocation2 + $0x160] sm:$0xf]
    %v265 = vld [vmem:[#allocation2 + $0x164] sm:$0xf]
    %v266 = vld [vmem:[#allocation2 + $0x168] sm:$0xf]
    %v267 = vld [vmem:[#allocation2 + $0x16c] sm:$0xf]
    %v268 = vld [vmem:[#allocation2 + $0x170] sm:$0xf]
    %v269 = vld [vmem:[#allocation2 + $0x174] sm:$0xf]
    %v270 = vld [vmem:[#allocation2 + $0x178] sm:$0xf]
    %v271 = vld [vmem:[#allocation2 + $0x17c] sm:$0xf]
    %v272 = vld [vmem:[#allocation2 + $0x180] sm:$0xf]
    %v273 = vld [vmem:[#allocation2 + $0x184] sm:$0xf]
    %v274 = vld [vmem:[#allocation2 + $0x188] sm:$0xf]
    %v275 = vld [vmem:[#allocation2 + $0x18c] sm:$0xf]
    %v276 = vld [vmem:[#allocation2 + $0x190] sm:$0xf]
    %v277 = vld [vmem:[#allocation2 + $0x194] sm:$0xf]
    %v278 = vld [vmem:[#allocation2 + $0x198] sm:$0xf]
    %v279 = vld [vmem:[#allocation2 + $0x19c] sm:$0xf]
    %v280 = vld [vmem:[#allocation2 + $0x1a0] sm:$0xf]
    %v281 = vld [vmem:[#allocation2 + $0x1a4] sm:$0xf]
    %v282 = vld [vmem:[#allocation2 + $0x1a8] sm:$0xf]
    %v283 = vld [vmem:[#allocation2 + $0x1ac] sm:$0xf]
    %v284 = vld [vmem:[#allocation2 + $0x1b0] sm:$0xf]
    %v285 = vld [vmem:[#allocation2 + $0x1b4] sm:$0xf]
    %v286 = vld [vmem:[#allocation2 + $0x1b8] sm:$0xf]
    %v287 = vld [vmem:[#allocation2 + $0x1bc] sm:$0xf]
    %v288 = vld [vmem:[#allocation2 + $0x1c0] sm:$0xf]
    %v289 = vld [vmem:[#allocation2 + $0x1c4] sm:$0xf]
    %v290 = vld [vmem:[#allocation2 + $0x1c8] sm:$0xf]
    %v291 = vld [vmem:[#allocation2 + $0x1cc] sm:$0xf]
    %v292 = vld [vmem:[#allocation2 + $0x1d0] sm:$0xf]
    %v293 = vld [vmem:[#allocation2 + $0x1d4] sm:$0xf]
    %v294 = vld [vmem:[#allocation2 + $0x1d8] sm:$0xf]
    %v295 = vld [vmem:[#allocation2 + $0x1dc] sm:$0xf]
    %v296 = vld [vmem:[#allocation2 + $0x1e0] sm:$0xf]
    %v297 = vld [vmem:[#allocation2 + $0x1e4] sm:$0xf]
    %v298 = vld [vmem:[#allocation2 + $0x1e8] sm:$0xf]
    %v299 = vld [vmem:[#allocation2 + $0x1ec] sm:$0xf]
    %v300 = vld [vmem:[#allocation2 + $0x1f0] sm:$0xf]
    %v301 = vld [vmem:[#allocation2 + $0x1f4] sm:$0xf]
    %v302 = vld [vmem:[#allocation2 + $0x1f8] sm:$0xf]
    %v303 = vld [vmem:[#allocation2 + $0x1fc] sm:$0xf]
    %v432 = vunpack.c.l.b16 %v176
    %v433 = vunpack.c.l.b16 %v177
    %v434 = vunpack.c.l.b16 %v178
    %v435 = vunpack.c.l.b16 %v179
    %v436 = vunpack.c.l.b16 %v180
    %v437 = vunpack.c.l.b16 %v181
    %v438 = vunpack.c.l.b16 %v182
    %v439 = vunpack.c.l.b16 %v183
    %v440 = vunpack.c.l.b16 %v184
    %v441 = vunpack.c.l.b16 %v185
    %v442 = vunpack.c.l.b16 %v186
    %v443 = vunpack.c.l.b16 %v187
    %v444 = vunpack.c.l.b16 %v188
    %v445 = vunpack.c.l.b16 %v189
    %v446 = vunpack.c.l.b16 %v190
    %v447 = vunpack.c.l.b16 %v191
    %v448 = vunpack.c.l.b16 %v192
    %v449 = vunpack.c.l.b16 %v193
    %v450 = vunpack.c.l.b16 %v194
    %v451 = vunpack.c.l.b16 %v195
    %v452 = vunpack.c.l.b16 %v196
    %v453 = vunpack.c.l.b16 %v197
    %v454 = vunpack.c.l.b16 %v198
    %v455 = vunpack.c.l.b16 %v199
    %v456 = vunpack.c.l.b16 %v200
    %v457 = vunpack.c.l.b16 %v201
    %v458 = vunpack.c.l.b16 %v202
    %v459 = vunpack.c.l.b16 %v203
    %v460 = vunpack.c.l.b16 %v204
    %v461 = vunpack.c.l.b16 %v205
    %v462 = vunpack.c.l.b16 %v206
    %v463 = vunpack.c.l.b16 %v207
    %v464 = vunpack.c.l.b16 %v208
    %v465 = vunpack.c.l.b16 %v209
    %v466 = vunpack.c.l.b16 %v210
    %v467 = vunpack.c.l.b16 %v211
    %v468 = vunpack.c.l.b16 %v212
    %v469 = vunpack.c.l.b16 %v213
    %v470 = vunpack.c.l.b16 %v214
    %v471 = vunpack.c.l.b16 %v215
    %v472 = vunpack.c.l.b16 %v216
    %v473 = vunpack.c.l.b16 %v217
    %v474 = vunpack.c.l.b16 %v218
    %v475 = vunpack.c.l.b16 %v219
    %v476 = vunpack.c.l.b16 %v220
    %v477 = vunpack.c.l.b16 %v221
    %v478 = vunpack.c.l.b16 %v222
    %v479 = vunpack.c.l.b16 %v223
    %v480 = vunpack.c.l.b16 %v224
    %v481 = vunpack.c.l.b16 %v225
    %v482 = vunpack.c.l.b16 %v226
    %v483 = vunpack.c.l.b16 %v227
    %v484 = vunpack.c.l.b16 %v228
    %v485 = vunpack.c.l.b16 %v229
    %v486 = vunpack.c.l.b16 %v230
    %v487 = vunpack.c.l.b16 %v231
    %v488 = vunpack.c.l.b16 %v232
    %v489 = vunpack.c.l.b16 %v233
    %v490 = vunpack.c.l.b16 %v234
    %v491 = vunpack.c.l.b16 %v235
    %v492 = vunpack.c.l.b16 %v236
    %v493 = vunpack.c.l.b16 %v237
    %v494 = vunpack.c.l.b16 %v238
    %v495 = vunpack.c.l.b16 %v239
    %v496 = vunpack.c.l.b16 %v240
    %v497 = vunpack.c.l.b16 %v241
    %v498 = vunpack.c.l.b16 %v242
    %v499 = vunpack.c.l.b16 %v243
    %v500 = vunpack.c.l.b16 %v244
    %v501 = vunpack.c.l.b16 %v245
    %v502 = vunpack.c.l.b16 %v246
    %v503 = vunpack.c.l.b16 %v247
    %v504 = vunpack.c.l.b16 %v248
    %v505 = vunpack.c.l.b16 %v249
    %v506 = vunpack.c.l.b16 %v250
    %v507 = vunpack.c.l.b16 %v251
    %v508 = vunpack.c.l.b16 %v252
    %v509 = vunpack.c.l.b16 %v253
    %v510 = vunpack.c.l.b16 %v254
    %v511 = vunpack.c.l.b16 %v255
    %v512 = vunpack.c.l.b16 %v256
    %v513 = vunpack.c.l.b16 %v257
    %v514 = vunpack.c.l.b16 %v258
    %v515 = vunpack.c.l.b16 %v259
    %v516 = vunpack.c.l.b16 %v260
    %v517 = vunpack.c.l.b16 %v261
    %v518 = vunpack.c.l.b16 %v262
    %v519 = vunpack.c.l.b16 %v263
    %v520 = vunpack.c.l.b16 %v264
    %v521 = vunpack.c.l.b16 %v265
    %v522 = vunpack.c.l.b16 %v266
    %v523 = vunpack.c.l.b16 %v267
    %v524 = vunpack.c.l.b16 %v268
    %v525 = vunpack.c.l.b16 %v269
    %v526 = vunpack.c.l.b16 %v270
    %v527 = vunpack.c.l.b16 %v271
    %v528 = vunpack.c.l.b16 %v272
    %v529 = vunpack.c.l.b16 %v273
    %v530 = vunpack.c.l.b16 %v274
    %v531 = vunpack.c.l.b16 %v275
    %v532 = vunpack.c.l.b16 %v276
    %v533 = vunpack.c.l.b16 %v277
    %v534 = vunpack.c.l.b16 %v278
    %v535 = vunpack.c.l.b16 %v279
    %v536 = vunpack.c.l.b16 %v280
    %v537 = vunpack.c.l.b16 %v281
    %v538 = vunpack.c.l.b16 %v282
    %v539 = vunpack.c.l.b16 %v283
    %v540 = vunpack.c.l.b16 %v284
    %v541 = vunpack.c.l.b16 %v285
    %v542 = vunpack.c.l.b16 %v286
    %v543 = vunpack.c.l.b16 %v287
    %v544 = vunpack.c.l.b16 %v288
    %v545 = vunpack.c.l.b16 %v289
    %v546 = vunpack.c.l.b16 %v290
    %v547 = vunpack.c.l.b16 %v291
    %v548 = vunpack.c.l.b16 %v292
    %v549 = vunpack.c.l.b16 %v293
    %v550 = vunpack.c.l.b16 %v294
    %v551 = vunpack.c.l.b16 %v295
    %v552 = vunpack.c.l.b16 %v296
    %v553 = vunpack.c.l.b16 %v297
    %v554 = vunpack.c.l.b16 %v298
    %v555 = vunpack.c.l.b16 %v299
    %v556 = vunpack.c.l.b16 %v300
    %v557 = vunpack.c.l.b16 %v301
    %v558 = vunpack.c.l.b16 %v302
    %v559 = vunpack.c.l.b16 %v303
    %v560 = vpack.c.b16 %v433, %v432
    %v561 = vpack.c.b16 %v435, %v434
    %v562 = vpack.c.b16 %v437, %v436
    %v563 = vpack.c.b16 %v439, %v438
    %v564 = vpack.c.b16 %v441, %v440
    %v565 = vpack.c.b16 %v443, %v442
    %v566 = vpack.c.b16 %v445, %v444
    %v567 = vpack.c.b16 %v447, %v446
    %v568 = vpack.c.b16 %v449, %v448
    %v569 = vpack.c.b16 %v451, %v450
    %v570 = vpack.c.b16 %v453, %v452
    %v571 = vpack.c.b16 %v455, %v454
    %v572 = vpack.c.b16 %v457, %v456
    %v573 = vpack.c.b16 %v459, %v458
    %v574 = vpack.c.b16 %v461, %v460
    %v575 = vpack.c.b16 %v463, %v462
    %v576 = vpack.c.b16 %v465, %v464
    %v577 = vpack.c.b16 %v467, %v466
    %v578 = vpack.c.b16 %v469, %v468
    %v579 = vpack.c.b16 %v471, %v470
    %v580 = vpack.c.b16 %v473, %v472
    %v581 = vpack.c.b16 %v475, %v474
    %v582 = vpack.c.b16 %v477, %v476
    %v583 = vpack.c.b16 %v479, %v478
    %v584 = vpack.c.b16 %v481, %v480
    %v585 = vpack.c.b16 %v483, %v482
    %v586 = vpack.c.b16 %v485, %v484
    %v587 = vpack.c.b16 %v487, %v486
    %v588 = vpack.c.b16 %v489, %v488
    %v589 = vpack.c.b16 %v491, %v490
    %v590 = vpack.c.b16 %v493, %v492
    %v591 = vpack.c.b16 %v495, %v494
    %v592 = vpack.c.b16 %v497, %v496
    %v593 = vpack.c.b16 %v499, %v498
    %v594 = vpack.c.b16 %v501, %v500
    %v595 = vpack.c.b16 %v503, %v502
    %v596 = vpack.c.b16 %v505, %v504
    %v597 = vpack.c.b16 %v507, %v506
    %v598 = vpack.c.b16 %v509, %v508
    %v599 = vpack.c.b16 %v511, %v510
    %v600 = vpack.c.b16 %v513, %v512
    %v601 = vpack.c.b16 %v515, %v514
    %v602 = vpack.c.b16 %v517, %v516
    %v603 = vpack.c.b16 %v519, %v518
    %v604 = vpack.c.b16 %v521, %v520
    %v605 = vpack.c.b16 %v523, %v522
    %v606 = vpack.c.b16 %v525, %v524
    %v607 = vpack.c.b16 %v527, %v526
    %v608 = vpack.c.b16 %v529, %v528
    %v609 = vpack.c.b16 %v531, %v530
    %v610 = vpack.c.b16 %v533, %v532
    %v611 = vpack.c.b16 %v535, %v534
    %v612 = vpack.c.b16 %v537, %v536
    %v613 = vpack.c.b16 %v539, %v538
    %v614 = vpack.c.b16 %v541, %v540
    %v615 = vpack.c.b16 %v543, %v542
    %v616 = vpack.c.b16 %v545, %v544
    %v617 = vpack.c.b16 %v547, %v546
    %v618 = vpack.c.b16 %v549, %v548
    %v619 = vpack.c.b16 %v551, %v550
    %v620 = vpack.c.b16 %v553, %v552
    %v621 = vpack.c.b16 %v555, %v554
    %v622 = vpack.c.b16 %v557, %v556
    %v623 = vpack.c.b16 %v559, %v558
    %688 = vmatpush.bf16.msra.mxu0 %v567
    %689 = vmatpush.bf16.msra.mxu0 %v566
    %690 = vmatpush.bf16.msra.mxu0 %v565
    %691 = vmatpush.bf16.msra.mxu0 %v564
    %692 = vmatpush.bf16.msra.mxu0 %v563
    %693 = vmatpush.bf16.msra.mxu0 %v562
    %694 = vmatpush.bf16.msra.mxu0 %v561
    %695 = vmatpush.bf16.msra.mxu0 %v560
    %696 = vmatmul.bf16.gmra.mxu0 %v159
    %v697 = vpop.f32.mrf.mxu0
    %v698 = vadd.f32 0.0, %v697
    %v699 = vpop.f32.mrf.mxu0
    %700 = vdwg.mxu0
    %701 = vmatpush.bf16.msra.mxu0 %v575
    %702 = vmatpush.bf16.msra.mxu0 %v574
    %703 = vmatpush.bf16.msra.mxu0 %v573
    %704 = vmatpush.bf16.msra.mxu0 %v572
    %705 = vmatpush.bf16.msra.mxu0 %v571
    %706 = vmatpush.bf16.msra.mxu0 %v570
    %707 = vmatpush.bf16.msra.mxu0 %v569
    %708 = vmatpush.bf16.msra.mxu0 %v568
    %709 = vmatmul.bf16.gmra.mxu0 %v161
    %v710 = vpop.f32.mrf.mxu0
    %v711 = vadd.f32 %v698, %v710
    %v712 = vpop.f32.mrf.mxu0
    %713 = vdwg.mxu0
    %714 = vmatpush.bf16.msra.mxu0 %v583
    %715 = vmatpush.bf16.msra.mxu0 %v582
    %716 = vmatpush.bf16.msra.mxu0 %v581
    %717 = vmatpush.bf16.msra.mxu0 %v580
    %718 = vmatpush.bf16.msra.mxu0 %v579
    %719 = vmatpush.bf16.msra.mxu0 %v578
    %720 = vmatpush.bf16.msra.mxu0 %v577
    %721 = vmatpush.bf16.msra.mxu0 %v576
    %722 = vmatmul.bf16.gmra.mxu0 %v163
    %v723 = vpop.f32.mrf.mxu0
    %v724 = vadd.f32 %v711, %v723
    %v725 = vpop.f32.mrf.mxu0
    %726 = vdwg.mxu0
    %727 = vmatpush.bf16.msra.mxu0 %v591
    %728 = vmatpush.bf16.msra.mxu0 %v590
    %729 = vmatpush.bf16.msra.mxu0 %v589
    %730 = vmatpush.bf16.msra.mxu0 %v588
    %731 = vmatpush.bf16.msra.mxu0 %v587
    %732 = vmatpush.bf16.msra.mxu0 %v586
    %733 = vmatpush.bf16.msra.mxu0 %v585
    %734 = vmatpush.bf16.msra.mxu0 %v584
    %735 = vmatmul.bf16.gmra.mxu0 %v165
    %v736 = vpop.f32.mrf.mxu0
    %v737 = vadd.f32 %v724, %v736
    %v738 = vpop.f32.mrf.mxu0
    %739 = vdwg.mxu0
    %740 = vmatpush.bf16.msra.mxu0 %v599
    %741 = vmatpush.bf16.msra.mxu0 %v598
    %742 = vmatpush.bf16.msra.mxu0 %v597
    %743 = vmatpush.bf16.msra.mxu0 %v596
    %744 = vmatpush.bf16.msra.mxu0 %v595
    %745 = vmatpush.bf16.msra.mxu0 %v594
    %746 = vmatpush.bf16.msra.mxu0 %v593
    %747 = vmatpush.bf16.msra.mxu0 %v592
    %748 = vmatmul.bf16.gmra.mxu0 %v167
    %v749 = vpop.f32.mrf.mxu0
    %v750 = vadd.f32 %v737, %v749
    %v751 = vpop.f32.mrf.mxu0
    %752 = vdwg.mxu0
    %753 = vmatpush.bf16.msra.mxu0 %v607
    %754 = vmatpush.bf16.msra.mxu0 %v606
    %755 = vmatpush.bf16.msra.mxu0 %v605
    %756 = vmatpush.bf16.msra.mxu0 %v604
    %757 = vmatpush.bf16.msra.mxu0 %v603
    %758 = vmatpush.bf16.msra.mxu0 %v602
    %759 = vmatpush.bf16.msra.mxu0 %v601
    %760 = vmatpush.bf16.msra.mxu0 %v600
    %761 = vmatmul.bf16.gmra.mxu0 %v169
    %v762 = vpop.f32.mrf.mxu0
    %v763 = vadd.f32 %v750, %v762
    %v764 = vpop.f32.mrf.mxu0
    %765 = vdwg.mxu0
    %766 = vmatpush.bf16.msra.mxu0 %v615
    %767 = vmatpush.bf16.msra.mxu0 %v614
    %768 = vmatpush.bf16.msra.mxu0 %v613
    %769 = vmatpush.bf16.msra.mxu0 %v612
    %770 = vmatpush.bf16.msra.mxu0 %v611
    %771 = vmatpush.bf16.msra.mxu0 %v610
    %772 = vmatpush.bf16.msra.mxu0 %v609
    %773 = vmatpush.bf16.msra.mxu0 %v608
    %774 = vmatmul.bf16.gmra.mxu0 %v171
    %v775 = vpop.f32.mrf.mxu0
    %v776 = vadd.f32 %v763, %v775
    %v777 = vpop.f32.mrf.mxu0
    %778 = vdwg.mxu0
    %779 = vmatpush.bf16.msra.mxu0 %v623
    %780 = vmatpush.bf16.msra.mxu0 %v622
    %781 = vmatpush.bf16.msra.mxu0 %v621
    %782 = vmatpush.bf16.msra.mxu0 %v620
    %783 = vmatpush.bf16.msra.mxu0 %v619
    %784 = vmatpush.bf16.msra.mxu0 %v618
    %785 = vmatpush.bf16.msra.mxu0 %v617
    %786 = vmatpush.bf16.msra.mxu0 %v616
    %787 = vmatmul.bf16.gmra.mxu0 %v173
    %v788 = vpop.f32.mrf.mxu0
    %v789 = vadd.f32 %v776, %v788
    %v790 = vpop.f32.mrf.mxu0
    %791 = vdwg.mxu0
    %v792 = vadd.f32 %v175, %v789
    %793 = vst [vmem:[%s5] sm:$0xff] %v792
    // Predicated region
    $region30: #{prompt_loss2_forward.1} parent=1 // pred_check
      %p794 = pneg %p39
    $region31: #{prompt_loss2_forward.1} parent=1 // pred_check_branch
      %796 = sbr.rel (%p794) target = $region33
    $region32: #{prompt_loss2_forward.1} parent=1 // pred_region
      %v797 = vld [vmem:[%s5] sm:$0xff]
      %v798 = vld [vmem:[%s1] sm:$0xf]
      %v799 = vand.u32 2147483647, %v797
      %v800 = vpack.c.bf16 %v799, %v799
      %v801 = vld [vmem:[%s4] sm:$0xff]
      %v802 = vld [vmem:[%s4 + $0x8] sm:$0xff]
      %v803 = vld [vmem:[%s4 + $0x10] sm:$0xff]
      %v804 = vld [vmem:[%s4 + $0x18] sm:$0xff]
      %v805 = vld [vmem:[%s4 + $0x20] sm:$0xff]
      %v806 = vld [vmem:[%s4 + $0x28] sm:$0xff]
      %v807 = vld [vmem:[%s4 + $0x30] sm:$0xff]
      %v808 = vld [vmem:[%s4 + $0x38] sm:$0xff]
      %v809 = vld [vmem:[%s4 + $0x40] sm:$0xff]
      %v810 = vld [vmem:[%s4 + $0x48] sm:$0xff]
      %v811 = vld [vmem:[%s4 + $0x50] sm:$0xff]
      %v812 = vld [vmem:[%s4 + $0x58] sm:$0xff]
      %v813 = vld [vmem:[%s4 + $0x60] sm:$0xff]
      %v814 = vld [vmem:[%s4 + $0x68] sm:$0xff]
      %v815 = vld [vmem:[%s4 + $0x70] sm:$0xff]
      %v816 = vld [vmem:[%s4 + $0x78] sm:$0xff]
      %v833 = vunpack.c.l.b16 %v801
      %v834 = vunpack.c.h.b16 %v801
      %v835 = vunpack.c.l.b16 %v802
      %v836 = vunpack.c.h.b16 %v802
      %v837 = vunpack.c.l.b16 %v803
      %v838 = vunpack.c.h.b16 %v803
      %v839 = vunpack.c.l.b16 %v804
      %v840 = vunpack.c.h.b16 %v804
      %v841 = vunpack.c.l.b16 %v805
      %v842 = vunpack.c.h.b16 %v805
      %v843 = vunpack.c.l.b16 %v806
      %v844 = vunpack.c.h.b16 %v806
      %v845 = vunpack.c.l.b16 %v807
      %v846 = vunpack.c.h.b16 %v807
      %v847 = vunpack.c.l.b16 %v808
      %v848 = vunpack.c.h.b16 %v808
      %v849 = vunpack.c.l.b16 %v809
      %v850 = vunpack.c.h.b16 %v809
      %v851 = vunpack.c.l.b16 %v810
      %v852 = vunpack.c.h.b16 %v810
      %v853 = vunpack.c.l.b16 %v811
      %v854 = vunpack.c.h.b16 %v811
      %v855 = vunpack.c.l.b16 %v812
      %v856 = vunpack.c.h.b16 %v812
      %v857 = vunpack.c.l.b16 %v813
      %v858 = vunpack.c.h.b16 %v813
      %v859 = vunpack.c.l.b16 %v814
      %v860 = vunpack.c.h.b16 %v814
      %v861 = vunpack.c.l.b16 %v815
      %v862 = vunpack.c.h.b16 %v815
      %v863 = vunpack.c.l.b16 %v816
      %v864 = vunpack.c.h.b16 %v816
      %v865 = vpack.c.b16 %v835, %v833
      %v866 = vpack.c.b16 %v836, %v834
      %v867 = vpack.c.b16 %v839, %v837
      %v868 = vpack.c.b16 %v840, %v838
      %v869 = vpack.c.b16 %v843, %v841
      %v870 = vpack.c.b16 %v844, %v842
      %v871 = vpack.c.b16 %v847, %v845
      %v872 = vpack.c.b16 %v848, %v846
      %v873 = vpack.c.b16 %v851, %v849
      %v874 = vpack.c.b16 %v852, %v850
      %v875 = vpack.c.b16 %v855, %v853
      %v876 = vpack.c.b16 %v856, %v854
      %v877 = vpack.c.b16 %v859, %v857
      %v878 = vpack.c.b16 %v860, %v858
      %v879 = vpack.c.b16 %v863, %v861
      %v880 = vpack.c.b16 %v864, %v862
      %897 = vmatpush.bf16.msra.mxu0 %v879
      %898 = vmatpush.bf16.msra.mxu0 %v877
      %899 = vmatpush.bf16.msra.mxu0 %v875
      %900 = vmatpush.bf16.msra.mxu0 %v873
      %901 = vmatpush.bf16.msra.mxu0 %v871
      %902 = vmatpush.bf16.msra.mxu0 %v869
      %903 = vmatpush.bf16.msra.mxu0 %v867
      %904 = vmatpush.bf16.msra.mxu0 %v865
      %905 = vmatmul.bf16.gmra.mxu0 %v800
      %v906 = vpop.f32.mrf.mxu0
      %v907 = vadd.f32 0.0, %v906
      %v908 = vpop.f32.mrf.mxu0
      %909 = vdwg.mxu0
      %910 = vmatpush.bf16.msra.mxu0 %v880
      %911 = vmatpush.bf16.msra.mxu0 %v878
      %912 = vmatpush.bf16.msra.mxu0 %v876
      %913 = vmatpush.bf16.msra.mxu0 %v874
      %914 = vmatpush.bf16.msra.mxu0 %v872
      %915 = vmatpush.bf16.msra.mxu0 %v870
      %916 = vmatpush.bf16.msra.mxu0 %v868
      %917 = vmatpush.bf16.msra.mxu0 %v866
      %918 = vmatmul.bf16.gmra.mxu0 %v800
      %v919 = vpop.f32.mrf.mxu0
      %v920 = vadd.f32 0.0, %v919
      %v921 = vpop.f32.mrf.mxu0
      %922 = vdwg.mxu0
      %v923 = vsel %vm69, %v907, 0.0
      %v924 = vsel %vm69, %v920, 0.0
      %v925 = vadd.f32 %v923, %v924
      %926 = vadd.xlane.f32.xlu0 %v925
      %v927 = vpop.xlane.xlu0 %926
      %v928 = vadd.f32 %v927, 1e-12
      %v929 = vrcp.pop %v928
      %v930 = vmul.f32 %v928, %v929
      %v931 = vsub.f32 1.0, %v930
      %v932 = vmul.f32 %v929, %v931
      %v933 = vadd.f32 %v929, %v932
      %vm934 = vweird.f32 %v928
      %vm935 = vweird.f32 %v929
      %vm936 = vmor %vm934, %vm935
      %v937 = vsel %vm936, %v929, %v933
      %v938 = vand.u32 2147483647, %v928
      %vm939 = vcmp.eq.f32.partialorder %v938, 8.507059e+37
      %v940 = vand.u32 %v928, 2147483648
      %v941 = vor.u32 1.1754944e-38, %v940
      %v942 = vsel %vm939, %v941, %v937
      %v943 = vmul.f32 %v907, %v942
      %v944 = vmul.f32 %v920, %v942
      %v945 = vsel %vm69, %v943, -inf
      %v946 = vsel %vm69, %v944, -inf
      %v947 = vmax.f32 %v945, %v946
      %948 = vmax.xlane.f32.xlu0 %v947
      %v949 = vpop.xlane.xlu0 %948
      %v950 = vadd.f32 %v949, 1e-12
      %v951 = vrcp.pop %v950
      %v952 = vmul.f32 %v950, %v951
      %v953 = vsub.f32 1.0, %v952
      %v954 = vmul.f32 %v951, %v953
      %v955 = vadd.f32 %v951, %v954
      %vm956 = vweird.f32 %v950
      %vm957 = vweird.f32 %v951
      %vm958 = vmor %vm956, %vm957
      %v959 = vsel %vm958, %v951, %v955
      %v960 = vand.u32 2147483647, %v950
      %vm961 = vcmp.eq.f32.partialorder %v960, 8.507059e+37
      %v962 = vand.u32 %v950, 2147483648
      %v963 = vor.u32 1.1754944e-38, %v962
      %v964 = vsel %vm961, %v963, %v959
      %v965 = vmul.f32 %v943, %v964
      %v966 = vmul.f32 %v944, %v964
      %v967 = vsub.f32 %v965, 0.1
      %v968 = vsub.f32 %v966, 0.1
      %v969 = vmul.f32 %v967, 20.0
      %v970 = vmul.f32 %v968, 20.0
      %v971 = vxor.u32 %v969, 2147483648
      %v972 = vxor.u32 %v970, 2147483648
      %v973 = vmul.f32 %v971, 1.442695
      %v974 = vpow.pop %v973
      %v975 = vmul.f32 %v972, 1.442695
      %v976 = vpow.pop %v975
      %v977 = vadd.f32 %v974, 1.0
      %v978 = vadd.f32 %v976, 1.0
      %v979 = vrcp.pop %v977
      %v980 = vmul.f32 %v977, %v979
      %v981 = vsub.f32 1.0, %v980
      %v982 = vmul.f32 %v979, %v981
      %v983 = vadd.f32 %v979, %v982
      %vm984 = vweird.f32 %v977
      %vm985 = vweird.f32 %v979
      %vm986 = vmor %vm984, %vm985
      %v987 = vsel %vm986, %v979, %v983
      %v988 = vand.u32 2147483647, %v977
      %vm989 = vcmp.eq.f32.partialorder %v988, 8.507059e+37
      %v990 = vand.u32 %v977, 2147483648
      %v991 = vor.u32 1.1754944e-38, %v990
      %v992 = vsel %vm989, %v991, %v987
      %v993 = vmul.f32 1.0, %v992
      %v994 = vrcp.pop %v978
      %v995 = vmul.f32 %v978, %v994
      %v996 = vsub.f32 1.0, %v995
      %v997 = vmul.f32 %v994, %v996
      %v998 = vadd.f32 %v994, %v997
      %vm999 = vweird.f32 %v978
      %vm1000 = vweird.f32 %v994
      %vm1001 = vmor %vm999, %vm1000
      %v1002 = vsel %vm1001, %v994, %v998
      %v1003 = vand.u32 2147483647, %v978
      %vm1004 = vcmp.eq.f32.partialorder %v1003, 8.507059e+37
      %v1005 = vand.u32 %v978, 2147483648
      %v1006 = vor.u32 1.1754944e-38, %v1005
      %v1007 = vsel %vm1004, %v1006, %v1002
      %v1008 = vmul.f32 1.0, %v1007
      %1010 = vst [vmem:[#allocation1] ss:$4 sm:$0xff] %v798
      %v1011 = vld.sshfl [vmem:[#allocation1] sm:$0xff pattern:$0x73625140]
      %v1012 = vld.sshfl [vmem:[#allocation1 + $0x8] sm:$0xff pattern:$0x73625140]
      %v1015 = vmul.f32 %v993, %v1011
      %v1016 = vmul.f32 %v1008, %v1012
      %v1017 = vsel %vm69, %v1015, 0.0
      %v1018 = vsel %vm69, %v1016, 0.0
      %v1019 = vadd.f32 %v1017, %v1018
      %1020 = vadd.xlane.f32.xlu0 %v1019
      %v1021 = vpop.xlane.xlu0 %1020
      %v1022 = vsub.f32 1.0, %v798
      %1024 = vst [vmem:[#allocation1] ss:$4 sm:$0xff] %v1022
      %v1025 = vld.sshfl [vmem:[#allocation1] sm:$0xff pattern:$0x73625140]
      %v1026 = vld.sshfl [vmem:[#allocation1 + $0x8] sm:$0xff pattern:$0x73625140]
      %v1029 = vmul.f32 %v993, %v1025
      %v1030 = vmul.f32 %v1008, %v1026
      %v1031 = vsel %vm69, %v1029, 0.0
      %v1032 = vsel %vm69, %v1030, 0.0
      %v1033 = vadd.f32 %v1031, %v1032
      %1034 = vadd.xlane.f32.xlu0 %v1033
      %v1035 = vpop.xlane.xlu0 %1034
      %v1036 = vmul.f32 %v1021, 2.0
      %v1037 = vadd.f32 %v1036, %v1035
      %v1038 = vadd.f32 %v1037, 1e-12
      %v1039 = vrcp.pop %v1038
      %v1040 = vmul.f32 %v1038, %v1039
      %v1041 = vsub.f32 1.0, %v1040
      %v1042 = vmul.f32 %v1039, %v1041
      %v1043 = vadd.f32 %v1039, %v1042
      %vm1044 = vweird.f32 %v1038
      %vm1045 = vweird.f32 %v1039
      %vm1046 = vmor %vm1044, %vm1045
      %v1047 = vsel %vm1046, %v1039, %v1043
      %v1048 = vand.u32 2147483647, %v1038
      %vm1049 = vcmp.eq.f32.partialorder %v1048, 8.507059e+37
      %v1050 = vand.u32 %v1038, 2147483648
      %v1051 = vor.u32 1.1754944e-38, %v1050
      %v1052 = vsel %vm1049, %v1051, %v1047
      %v1053 = vmul.f32 %v1036, %v1052
      %v1054 = vlaneseq
      %v1055 = vand.u32 %v1054, 127
      %vm1056 = vcmp.lt.s32.totalorder %v1055, 32
      %v1057 = vsel %vm1056, %v797, 0.0
      %v1058 = vmul.f32 %v1057, %v1057
      %1059 = vadd.xlane.f32.xlu0 %v1058
      %v1060 = vpop.xlane.xlu0 %1059
      %v1061 = vadd.f32 %v1060, 1e-12
      %v1062 = vrsqrt.pop %v1061
      %v1063 = vmul.f32 %v1062, %v1061
      %v1064 = vmul.f32 %v1063, %v1062
      %v1065 = vmul.f32 0.5, %v1064
      %v1066 = vsub.f32 1.5, %v1065
      %v1067 = vmul.f32 %v1062, %v1066
      %vm1068 = vweird.f32 %v1061
      %vm1069 = vweird.f32 %v1062
      %vm1070 = vmor %vm1068, %vm1069
      %v1071 = vsel %vm1070, %v1062, %v1067
      %v1072 = vmul.f32 %v1057, %v1071
      %v1073 = vld [vmem:[%s3] sm:$0x1]
      %v1074 = vmul.f32 %v1073, %v1073
      %v1075 = vsel %vm141, %v1074, 0.0
      %1076 = vadd.xlane.f32.xlu0 %v1075
      %v1077 = vpop.xlane.xlu0 %1076
      %v1078 = vadd.f32 %v1077, 1e-12
      %v1079 = vrsqrt.pop %v1078
      %v1080 = vmul.f32 %v1079, %v1078
      %v1081 = vmul.f32 %v1080, %v1079
      %v1082 = vmul.f32 0.5, %v1081
      %v1083 = vsub.f32 1.5, %v1082
      %v1084 = vmul.f32 %v1079, %v1083
      %vm1085 = vweird.f32 %v1078
      %vm1086 = vweird.f32 %v1079
      %vm1087 = vmor %vm1085, %vm1086
      %v1088 = vsel %vm1087, %v1079, %v1084
      %v1089 = vmul.f32 %v1073, %v1088
      %v1091 = vperm.slane %v1089, 0
      %v1093 = vsub.f32 %v1072, %v1091
      %v1094 = vmul.f32 %v1093, %v1093
      %1095 = vadd.xlane.f32.xlu0 %v1094
      %v1096 = vpop.xlane.xlu0 %1095
      %v1097 = vrsqrt.pop %v1096
      %v1098 = vmul.f32 %v1097, %v1096
      %v1099 = vmul.f32 %v1098, %v1097
      %v1100 = vmul.f32 0.5, %v1099
      %v1101 = vsub.f32 1.5, %v1100
      %v1102 = vmul.f32 %v1097, %v1101
      %v1103 = vmul.f32 %v1096, %v1102
      %vm1104 = vcmp.eq.f32.partialorder %v1096, inf
      %v1105 = vsel %vm1104, %v1096, %v1103
      %vm1106 = vcmp.eq.f32.partialorder %v1096, 0.0
      %v1107 = vand.u32 %v1096, 2147483648
      %v1108 = vsel %vm1106, %v1107, %v1105
      %v1109 = vmul.f32 %v1108, 0.5
      %v1111 = vrot.slane %v1053, 4
      %v1113 = vsel %vm73, %v1109, %v1111
      %vm1114 = vcmask 1045504
      %v1115 = vsel %vm1114, %v1113, 0.0
      %1116 = vst [vmem:[%s6] sm:$0xff] %v1115
    $region33: #{prompt_loss2_forward.1} parent=1 // pred_fallthru
      _
    // Predicated region
    $region34: #{prompt_loss2_forward.1} parent=1 // pred_check
      _
    $region35: #{prompt_loss2_forward.1} parent=1 // pred_check_branch
      %1118 = sbr.rel (0) target = $region37
    $region36: #{prompt_loss2_forward.1} parent=1 // pred_region
      _
    $region37: #{prompt_loss2_forward.1} parent=1 // pred_fallthru
      _
    // Predicated region
    $region38: #{prompt_loss2_forward.1} parent=1 // pred_check
      _
    $region39: #{prompt_loss2_forward.1} parent=1 // pred_check_branch
      %1120 = sbr.rel (0) target = $region41
    $region40: #{prompt_loss2_forward.1} parent=1 // pred_region
      _
    $region41: #{prompt_loss2_forward.1} parent=1 // pred_fallthru
      _
    // Predicated region
    $region42: #{prompt_loss2_forward.1} parent=1 // pred_check
      _
    $region43: #{prompt_loss2_forward.1} parent=1 // pred_check_branch
      %1122 = sbr.rel (0) target = $region45
    $region44: #{prompt_loss2_forward.1} parent=1 // pred_region
      _
    $region45: #{prompt_loss2_forward.1} parent=1 // pred_fallthru
      _
    // Predicated region
    $region46: #{prompt_loss2_forward.1} parent=1 // pred_check
      _
    $region47: #{prompt_loss2_forward.1} parent=1 // pred_check_branch
      %1124 = sbr.rel (0) target = $region49
    $region48: #{prompt_loss2_forward.1} parent=1 // pred_region
      _
    $region49: #{prompt_loss2_forward.1} parent=1 // pred_fallthru
      _
    %1125 = vsyncpa [#allocation3], 1

</llo_original>
